<compile_context>
chip_gen: v6e
topology: v6e:2x2x1
jax: 0.10.0
libtpu: 0.0.40
codegen_flags: <defaults>
</compile_context>

<pallas_src>
import functools

import jax
import jax.numpy as jnp
from jax.experimental import pallas as pl
from jax.experimental.pallas import tpu as pltpu


def _round_up(x, m):
    return (x + m - 1) // m * m


def _vmem_capacity_bytes():
    try:
        return int(pltpu.get_tpu_info().vmem_capacity_bytes)
    except Exception:
        return 64 * 1024 * 1024  # conservative (v7x-sized) fallback


def _num_tensorcores():
    try:
        kind = jax.devices()[0].device_kind.lower()
    except Exception:
        return 1
    # Megacore chips expose two TensorCores per chip; v5e/v6e have one.
    return 2 if any(tag in kind for tag in ("v7", "v5p", "v4")) else 1


def _layernorm_kernel(x_ref, g_ref, o_ref, *, eps, d_actual, narrow_second_pass):
    # Statistics always in fp32; two-pass variance (matches torch's centered
    # var, no cancellation).  The tile is VMEM-resident so the second pass is
    # free of HBM traffic.
    inv_d = 1.0 / d_actual
    x_in = x_ref[...]
    x = x_in.astype(jnp.float32)
    mean = jnp.sum(x, axis=-1, keepdims=True) * inv_d
    xc = x - mean
    var = jnp.sum(xc * xc, axis=-1, keepdims=True) * inv_d
    inv = jax.lax.rsqrt(var + eps)
    if narrow_second_pass:
        # 16-bit inputs: normalize in the packed input dtype (bf16 VALU on
        # v6e/v7x) to avoid re-reading the fp32 copy of x.  Stats stay fp32.
        dt = x_in.dtype
        o_ref[...] = ((x_in - mean.astype(dt)) * inv.astype(dt)
                      * g_ref[...].astype(dt)).astype(o_ref.dtype)
    else:
        o_ref[...] = (xc * inv * g_ref[...]).astype(o_ref.dtype)


_CANDIDATE_TILE_ROWS = (4096, 2048, 1024, 512, 256, 128, 64, 32, 16, 8)


def _choose_tile_rows(num_rows, per_row_bytes, budget_bytes, num_cores):
    # Biggest candidate that fits the per-step VMEM budget.
    tile = 8
    for cand in _CANDIDATE_TILE_ROWS:
        if cand * per_row_bytes <= budget_bytes:
            tile = cand
            break
    # ~1 MiB per-step DMA floor so the multi-step clamp never makes DMAs tiny.
    min_tile = min(tile, max(8, _round_up(pl.cdiv(1 << 20, per_row_bytes), 8)))
    # >= 2 pipelined grid steps per TensorCore (4 total on megacore chips).
    target_steps = 2 * max(1, num_cores)
    step_tile = _round_up(pl.cdiv(num_rows, target_steps), 8)
    tile = max(min(tile, step_tile), min_tile)
    # Never allocate a block larger than the (row-rounded) array itself.
    return min(tile, _round_up(num_rows, 8))


def layernorm(x, g, *, tile_rows=None):
    """LayerNorm over the last axis of x, scaled by gain g (no bias).

    Matches the PyTorch module: eps = 1e-5 for float32 inputs, 1e-3 otherwise;
    variance is the population (unbiased=False) variance.
    x: (..., D)   g: (D,)
    """
    eps = 1e-05 if x.dtype == jnp.float32 else 1e-03

    orig_shape = x.shape
    D = orig_shape[-1]
    x2 = x.reshape(-1, D)  # (R, D)
    R = x2.shape[0]

    out_dtype = x.dtype
    in_itemsize = jnp.dtype(x.dtype).itemsize
    out_itemsize = jnp.dtype(out_dtype).itemsize
    narrow_second_pass = in_itemsize < 4

    # Per-row VMEM footprint (lane-padded width): double-buffered input +
    # output plus ~2 fp32 temporaries of the live tile.
    dp = _round_up(D, 128)
    per_row = dp * (2 * in_itemsize + 2 * out_itemsize + 2 * 4)

    capacity = _vmem_capacity_bytes()
    budget = min((capacity * 3) // 8, 48 << 20)   # ~48 MiB (v5e/v6e), ~24 MiB (v7x)
    vmem_limit = min((capacity * 3) // 4, 96 << 20)  # ~96 MiB (v5e/v6e), ~48 MiB (v7x)

    if tile_rows is None:
        tile_rows = _choose_tile_rows(R, per_row, budget, _num_tensorcores())
    tile_rows = max(8, (tile_rows // 8) * 8)  # (8,128) sublane constraint

    needed = tile_rows * per_row + (2 << 20)
    if needed > vmem_limit:
        # Very large D: raise the scoped VMEM limit rather than fail.
        # TODO(synk): for D so large that even an 8-row tile overflows physical
        # VMEM, add a lane-axis reduction grid (s1/s2 accumulators in scratch).
        vmem_limit = min(needed, capacity - (8 << 20))

    grid = (pl.cdiv(R, tile_rows),)  # ragged last block handled by Pallas

    cost = pl.CostEstimate(
        flops=int(7 * R * D),
        transcendentals=int(R),
        bytes_accessed=int(R * D * (in_itemsize + out_itemsize) + D * 4),
    )

    # Gain precomputed in fp32 (single (1, D) row; per-step cast for the 16-bit
    # path is negligible).
    g2 = g.astype(jnp.float32).reshape(1, D)

    out = pl.pallas_call(
        functools.partial(
            _layernorm_kernel,
            eps=eps,
            d_actual=D,
            narrow_second_pass=narrow_second_pass,
        ),
        out_shape=jax.ShapeDtypeStruct((R, D), out_dtype),
        grid_spec=pltpu.PrefetchScalarGridSpec(
            num_scalar_prefetch=0,
            grid=grid,
            in_specs=[
                pl.BlockSpec((tile_rows, D), lambda i: (i, 0)),
                pl.BlockSpec((1, D), lambda i: (0, 0)),
            ],
            out_specs=pl.BlockSpec((tile_rows, D), lambda i: (i, 0)),
        ),
        compiler_params=pltpu.CompilerParams(
            dimension_semantics=("parallel",),
            vmem_limit_bytes=int(vmem_limit),
        ),
        cost_estimate=cost,
    )(x2, g2)

    return out.reshape(orig_shape)


if __name__ == "__main__":
    key = jax.random.PRNGKey(0)
    batch, seq, dim = 2, 8, 32

    x = jax.random.normal(key, (batch, seq, dim), dtype=jnp.float32)
    # Parameter init matches nn.Parameter(torch.ones(dim))
    g = jnp.ones((dim,), dtype=jnp.float32)

    y = layernorm(x, g)
    jax.block_until_ready(y)

    # Reference check in plain JAX (two-pass population variance, like torch).
    eps = 1e-05
    mean = jnp.mean(x, axis=-1, keepdims=True)
    var = jnp.mean((x - mean) ** 2, axis=-1, keepdims=True)
    y_ref = (x - mean) * jax.lax.rsqrt(var + eps) * g
    assert y.shape == x.shape and y.dtype == x.dtype
    assert jnp.allclose(y, y_ref, atol=1e-5, rtol=1e-5)

    print("KERNEL_OK")
</pallas_src>

<mosaic_0001>
module attributes {stable_mosaic.version = 11 : i64} {
  func.func @_layernorm_kernel(%arg0: i32, %arg1: memref<16x32xf32, #tpu.memory_space<vmem>>, %arg2: memref<1x32xf32, #tpu.memory_space<vmem>>, %arg3: memref<16x32xf32, #tpu.memory_space<vmem>>) attributes {dimension_semantics = [#tpu.dimension_semantics<parallel>], iteration_bounds = array<i64: 1>, scalar_prefetch = 0 : i64, scratch_operands = 0 : i64, tpu.core_type = #tpu.core_type<tc>, window_params = [{transform_indices = @transform_0, window_bounds = array<i64: 16, 32>}, {pipeline_mode = #tpu.pipeline_mode<synchronous>, transform_indices = @transform_1, window_bounds = array<i64: 1, 32>}, {transform_indices = @transform_2, window_bounds = array<i64: 16, 32>}]} {
    %c0 = arith.constant 0 : index
    %c0_0 = arith.constant 0 : index
    %0 = vector.load %arg1[%c0, %c0_0] : memref<16x32xf32, #tpu.memory_space<vmem>>, vector<16x32xf32>
    %cst = arith.constant dense<0.000000e+00> : vector<16xf32>
    %1 = vector.multi_reduction <add>, %0, %cst [1] : vector<16x32xf32> to vector<16xf32>
    %2 = vector.shape_cast %1 : vector<16xf32> to vector<16x1xf32>
    %cst_1 = arith.constant 3.125000e-02 : f32
    %3 = vector.broadcast %cst_1 : f32 to vector<16x1xf32>
    %4 = arith.mulf %2, %3 : vector<16x1xf32>
    %5 = vector.broadcast %4 : vector<16x1xf32> to vector<16x32xf32>
    %6 = arith.subf %0, %5 : vector<16x32xf32>
    %7 = arith.mulf %6, %6 : vector<16x32xf32>
    %cst_2 = arith.constant dense<0.000000e+00> : vector<16xf32>
    %8 = vector.multi_reduction <add>, %7, %cst_2 [1] : vector<16x32xf32> to vector<16xf32>
    %9 = vector.shape_cast %8 : vector<16xf32> to vector<16x1xf32>
    %cst_3 = arith.constant 3.125000e-02 : f32
    %10 = vector.broadcast %cst_3 : f32 to vector<16x1xf32>
    %11 = arith.mulf %9, %10 : vector<16x1xf32>
    %cst_4 = arith.constant 9.99999974E-6 : f32
    %12 = vector.broadcast %cst_4 : f32 to vector<16x1xf32>
    %13 = arith.addf %11, %12 : vector<16x1xf32>
    %14 = math.rsqrt %13 : vector<16x1xf32>
    %15 = vector.broadcast %14 : vector<16x1xf32> to vector<16x32xf32>
    %16 = arith.mulf %6, %15 : vector<16x32xf32>
    %c0_5 = arith.constant 0 : index
    %c0_6 = arith.constant 0 : index
    %17 = vector.load %arg2[%c0_5, %c0_6] : memref<1x32xf32, #tpu.memory_space<vmem>>, vector<1x32xf32>
    %18 = vector.broadcast %17 : vector<1x32xf32> to vector<16x32xf32>
    %19 = arith.mulf %16, %18 : vector<16x32xf32>
    %c0_7 = arith.constant 0 : index
    %c0_8 = arith.constant 0 : index
    %20 = vector.load %arg3[%c0_7, %c0_8] : memref<16x32xf32, #tpu.memory_space<vmem>>, vector<16x32xf32>
    tpu.vector_store %arg3[%c0_7, %c0_8], %19 {strides = array<i32>} : memref<16x32xf32, #tpu.memory_space<vmem>>, vector<16x32xf32>,
    return
  }
  func.func @transform_0(%arg0: i32) -> (i32, i32) {
    %c0_i32 = arith.constant 0 : i32
    %c0_i32_0 = arith.constant 0 : i32
    return %arg0, %c0_i32 : i32, i32
  }
  func.func @transform_1(%arg0: i32) -> (i32, i32) {
    %c0_i32 = arith.constant 0 : i32
    %c0_i32_0 = arith.constant 0 : i32
    %c0_i32_1 = arith.constant 0 : i32
    return %c0_i32, %c0_i32_0 : i32, i32
  }
  func.func @transform_2(%arg0: i32) -> (i32, i32) {
    %c0_i32 = arith.constant 0 : i32
    %c0_i32_0 = arith.constant 0 : i32
    return %arg0, %c0_i32 : i32, i32
  }
}

</mosaic_0001>

<llo_original>
// kernel: tpu_custom_call.1
$region0: #{tpu_custom_call.1}
  #allocation0 [shape = 'u32[]', space=smem, size = 0x4, offset = 0x4, fixed_abs, tag = 'smem constant byte address 0x4 - core index']
  #allocation1 [shape = 'u32[144,128]{1,0:T(1,128)}', space=vmem, size = 0x12000, scoped, tag = 'internal scratch']
  %s0 = inlined_call_operand.hbm [shape: f32[16,32], index: 0, kind: input, shape index: {}]
  %s1 = inlined_call_operand.vmem [shape: f32[1,32], index: 1, kind: input, shape index: {}]
  %s2 = inlined_call_operand.hbm [shape: f32[16,32], index: 2, kind: output, shape index: {}]
  %s3 = sld [smem:[#allocation0]]
  $region22: #{tpu_custom_call.1} parent=0
    _
  %s5 = ssub.s32 1, %s3
  %s6 = scalar_select 0, %s5, %s3
  $region1: #{tpu_custom_call.1} parent=0
    #allocation2 [shape = 'u8[8192]{0}', space=vmem, size = 0x2000, scoped, tag = 'input window, operand 0, single buffered']
    #allocation3 [shape = 's32[1]{0}', space=sflag, size = 0x4, scoped, tag = 'scoped memory for tpu_custom_call.1']
    #allocation4 [shape = 's32[1]{0}', space=sflag, size = 0x4, scoped, tag = 'scoped memory for tpu_custom_call.1']
    #allocation5 [shape = 'u8[8192]{0}', space=vmem, size = 0x2000, scoped, tag = 'output window, operand 0, single buffered']
    %7 = vsyncpa [#allocation3], 0
    %8 = vsyncpa [#allocation4], 0
    // Predicated region
    $region2: #{tpu_custom_call.1} parent=1 // pred_check
      _
    $region3: #{tpu_custom_call.1} parent=1 // pred_check_branch
      %10 = sbr.rel (0) target = $region5
    $region4: #{tpu_custom_call.1} parent=1 // pred_region
      %s12 = ssub.s32 256, 256
      %13 = vsyncadd [#allocation3], %s12
      %s14 = sshll.u32 [#allocation2], 4
      %s15 = int_to_ptr.vmem [resolvable:$true] %s14
      %20 = dma.hbm_to_vmem [thread:$0]  %s0, 256, %s15, [#allocation3], 128, 128, 8
    $region5: #{tpu_custom_call.1} parent=1 // pred_fallthru
      _
    // Predicated region
    $region6: #{tpu_custom_call.1} parent=1 // pred_check
      _
    $region7: #{tpu_custom_call.1} parent=1 // pred_check_branch
      %22 = sbr.rel (0) target = $region9
    $region8: #{tpu_custom_call.1} parent=1 // pred_region
      _
    $region9: #{tpu_custom_call.1} parent=1 // pred_fallthru
      _
    // Predicated region
    $region10: #{tpu_custom_call.1} parent=1 // pred_check
      _
    $region11: #{tpu_custom_call.1} parent=1 // pred_check_branch
      %24 = sbr.rel (0) target = $region13
    $region12: #{tpu_custom_call.1} parent=1 // pred_region
      %25 = dma.done [#allocation3], 256
    $region13: #{tpu_custom_call.1} parent=1 // pred_fallthru
      _
    %v26 = vld [vmem:[#allocation2] sm:$0xff]
    %v27 = vld [vmem:[#allocation2 + $0x8] sm:$0xff]
    %vm28 = vcmask 261120
    %v29 = vsel %vm28, %v26, 0.0
    %30 = vadd.xlane.f32.xlu0 %v29
    %v31 = vpop.xlane.xlu0 %30
    %v32 = vsel %vm28, %v27, 0.0
    %33 = vadd.xlane.f32.xlu0 %v32
    %v34 = vpop.xlane.xlu0 %33
    %v35 = vmul.f32 %v31, 0.03125
    %v36 = vmul.f32 %v34, 0.03125
    %v37 = vsub.f32 %v26, %v35
    %v38 = vsub.f32 %v27, %v36
    %v39 = vmul.f32 %v37, %v37
    %v40 = vmul.f32 %v38, %v38
    %v41 = vsel %vm28, %v39, 0.0
    %42 = vadd.xlane.f32.xlu0 %v41
    %v43 = vpop.xlane.xlu0 %42
    %v44 = vsel %vm28, %v40, 0.0
    %45 = vadd.xlane.f32.xlu0 %v44
    %v46 = vpop.xlane.xlu0 %45
    %v47 = vmul.f32 %v43, 0.03125
    %v48 = vmul.f32 %v46, 0.03125
    %v49 = vadd.f32 %v47, 1e-05
    %v50 = vadd.f32 %v48, 1e-05
    %v51 = vrsqrt.pop %v49
    %v52 = vrsqrt.pop %v50
    %v53 = vmul.f32 %v37, %v51
    %v54 = vmul.f32 %v38, %v52
    %v55 = vld [vmem:[%s1] sm:$0x1]
    %v57 = vlaneseq
    %v58 = vshrl.u32 %v57, 7
    %v59 = vsub.s32 0, %v58
    %v60 = vrot.slane %v55, %v59
    %v62 = vmul.f32 %v53, %v60
    %v63 = vmul.f32 %v54, %v60
    %64 = vst.msk [vmem:[#allocation5] sm:$0xff] %vm28, %v62
    %65 = vst.msk [vmem:[#allocation5 + $0x8] sm:$0xff] %vm28, %v63
    // Predicated region
    $region14: #{tpu_custom_call.1} parent=1 // pred_check
      _
    $region15: #{tpu_custom_call.1} parent=1 // pred_check_branch
      %67 = sbr.rel (0) target = $region17
    $region16: #{tpu_custom_call.1} parent=1 // pred_region
      %s69 = ssub.s32 256, 256
      %70 = vsyncadd [#allocation4], %s69
      %s71 = sshll.u32 [#allocation5], 4
      %s72 = int_to_ptr.vmem [resolvable:$true] %s71
      %77 = dma.vmem_to_hbm [thread:$0]  %s72, 256, %s2, [#allocation4], 128, 128, 8
    $region17: #{tpu_custom_call.1} parent=1 // pred_fallthru
      _
    // Predicated region
    $region18: #{tpu_custom_call.1} parent=1 // pred_check
      _
    $region19: #{tpu_custom_call.1} parent=1 // pred_check_branch
      %79 = sbr.rel (0) target = $region21
    $region20: #{tpu_custom_call.1} parent=1 // pred_region
      %80 = dma.done [#allocation4], 256
    $region21: #{tpu_custom_call.1} parent=1 // pred_fallthru
      _
    %81 = vsyncpa [#allocation3], 1
    %82 = vsyncpa [#allocation4], 1

</llo_original>
